<compile_context>
chip_gen: v7x
topology: tpu7x:2x2x1
jax: 0.10.0
libtpu: 0.0.40
codegen_flags: <defaults>
</compile_context>

<pallas_src>
import jax
import jax.numpy as jnp
from jax.experimental import pallas as pl
from jax.experimental.pallas import tpu as pltpu


def _fused_mlp_kernel(x_ref, wt_ref, out_ref, stats_ref):
    """Single grid step: run every layer on this batch tile.

    x_ref:     (bB, N)        input tile
    wt_ref:    (L, N, N)      pre-transposed weight stack (resident in VMEM)
    out_ref:   (bB, N)        final layer activation
    stats_ref: (1, 2, L, N)   per-lane partial sums: [sum(h), sum(h*h)] per layer
    """
    num_layers = wt_ref.shape[0]
    h = x_ref[...]

    sums = []
    sqs = []
    for layer in range(num_layers):  # static unroll: L is small & known at trace time
        # Canonical (M,K)x(K,N) MXU matmul: h @ W^T with W^T stored directly.
        y = jnp.dot(h, wt_ref[layer], preferred_element_type=jnp.float32)
        h = jnp.maximum(y, 0.0)                               # ReLU (VPU)
        sums.append(jnp.sum(h, axis=0, keepdims=True))        # (1, N) sublane reduce
        sqs.append(jnp.sum(h * h, axis=0, keepdims=True))     # (1, N)

    out_ref[...] = h.astype(out_ref.dtype)
    stats_ref[0, 0] = jnp.concatenate(sums, axis=0)           # (L, N)
    stats_ref[0, 1] = jnp.concatenate(sqs, axis=0)            # (L, N)


def mlp_fused(x, w_t_stack):
    """All layers in one pallas_call (single grid step per batch tile).

    Returns:
      out:   (B, N)            final layer activation
      stats: (tiles, 2, L, N)  per-lane partial sums / sums-of-squares per layer
    """
    B, N = x.shape
    L, n_in, n_out = w_t_stack.shape
    assert n_in == N and n_out == N
    assert B % 8 == 0 and N % 128 == 0, "shapes must be (8,128)-aligned"

    # v7x: split the batch across the two TensorCores when it is big enough
    # (each tile must stay sublane-aligned at 8).  B=8 -> single tile / step.
    num_b_tiles = 2 if (B >= 16 and (B // 2) % 8 == 0) else 1
    b_tile = B // num_b_tiles

    # VMEM budget for the single-step design (weights + in/out + stats, x2 for
    # double-buffered blocks).  256 KiB weights at L=4, N=128: trivially fits.
    ws_bytes = 4 * (L * N * N + 2 * B * N + num_b_tiles * 2 * L * N)
    assert 2 * ws_bytes < 32 * 1024 * 1024, "weight stack too large for single-step kernel"
    # TODO(synk): fall back to a layer-streamed grid ((1,N,N) weight blocks,
    # pl.Buffered(3) on v5e) once the full stack no longer fits scoped VMEM.

    return pl.pallas_call(
        _fused_mlp_kernel,
        out_shape=(
            jax.ShapeDtypeStruct((B, N), x.dtype),
            jax.ShapeDtypeStruct((num_b_tiles, 2, L, N), jnp.float32),
        ),
        grid=(num_b_tiles,),
        in_specs=[
            # Batch tile of the input.
            pl.BlockSpec((b_tile, N), lambda i: (i, 0)),
            # Whole weight stack, resident in VMEM across (the one or two) steps.
            pl.BlockSpec((L, N, N), lambda i: (0, 0, 0)),
        ],
        out_specs=(
            pl.BlockSpec((b_tile, N), lambda i: (i, 0)),
            pl.BlockSpec((1, 2, L, N), lambda i: (i, 0, 0, 0)),
        ),
        compiler_params=pltpu.CompilerParams(
            # Batch tiles are independent -> shard across TCs on v7x.
            dimension_semantics=("parallel",),
            vmem_limit_bytes=32 * 1024 * 1024,
        ),
    )(x, w_t_stack)


@jax.jit
def mlp_forward_device(x, w_t_stack):
    """Single dispatch: fused MLP + per-layer unbiased std (torch.std default)."""
    out, stats = mlp_fused(x, w_t_stack)
    n = x.shape[0] * x.shape[1]
    sums = jnp.sum(stats[:, 0], axis=(0, 2))       # (L,)  total sum per layer
    sqs = jnp.sum(stats[:, 1], axis=(0, 2))        # (L,)  total sum of squares
    var = (sqs - sums * sums / n) / (n - 1)        # unbiased, ddof=1
    var = jnp.maximum(var, 0.0)                    # clamp rounding; jnp.maximum keeps NaN
    stds = jnp.sqrt(var)
    return out, stds


def mlp_forward(x, w_t_stack):
    """Reproduces MLP.forward: per-layer Linear -> ReLU, printing std and
    breaking early if std is NaN.  One device->host sync on the hot path."""
    out, stds = mlp_forward_device(x, w_t_stack)
    jax.block_until_ready((out, stds))
    stds = jax.device_get(stds)

    num_layers = int(w_t_stack.shape[0])
    result = out
    for i in range(num_layers):
        std = float(stds[i])
        print("layer:{}, std:{}".format(i, std))
        if std != std:  # NaN check, matches torch.isnan(x.std())
            print("output is nan in {} layers".format(i))
            if i < num_layers - 1:
                # Rare debug path: recover the activation at the NaN layer by
                # rerunning the fused kernel truncated at that layer (avoids
                # dumping the full (L,B,N) activation stack on the hot path).
                result, _ = mlp_forward_device(x, w_t_stack[: i + 1])
                result = jax.block_until_ready(result)
            break
    return result


def init_mlp_weights(key, neural_num, layers):
    """Kaiming-normal init (fan_in=neural_num, gain=sqrt(2)), matching
    nn.init.kaiming_normal_ on a square bias-free nn.Linear.  The stack is
    stored PRE-TRANSPOSED ((in_features, out_features) per layer) so the kernel
    feeds the MXU a canonical (M,K)x(K,N) matmul with no per-layer relayout;
    for square iid-gaussian weights this is distribution-identical to the
    PyTorch (out, in) layout."""
    std = (2.0 / neural_num) ** 0.5
    keys = jax.random.split(key, layers)
    ws = [
        jax.random.normal(k, (neural_num, neural_num), dtype=jnp.float32) * std
        for k in keys
    ]
    return jnp.stack(ws, axis=0)


if __name__ == "__main__":
    neural_num = 128   # feature width N (lane-aligned to 128)
    layers = 4
    batch = 8          # sublane-aligned to 8; use >=16 to engage both v7x TCs

    key = jax.random.PRNGKey(0)
    k_x, k_w = jax.random.split(key)

    x = jax.random.normal(k_x, (batch, neural_num), dtype=jnp.float32)
    w_t_stack = init_mlp_weights(k_w, neural_num, layers)

    out = mlp_forward(x, w_t_stack)
    out = jax.block_until_ready(out)

    assert out.shape == (batch, neural_num)
    assert out.dtype == jnp.float32
    print("KERNEL_OK")
</pallas_src>

<mosaic_0001>
module attributes {stable_mosaic.version = 11 : i64} {
  func.func @_fused_mlp_kernel(%arg0: i32, %arg1: memref<8x128xf32, #tpu.memory_space<vmem>>, %arg2: memref<4x128x128xf32, #tpu.memory_space<vmem>>, %arg3: memref<8x128xf32, #tpu.memory_space<vmem>>, %arg4: memref<1x2x4x128xf32, #tpu.memory_space<vmem>>) attributes {dimension_semantics = [#tpu.dimension_semantics<parallel>], iteration_bounds = array<i64: 1>, scalar_prefetch = 0 : i64, scratch_operands = 0 : i64, tpu.core_type = #tpu.core_type<tc>, window_params = [{transform_indices = @transform_0, window_bounds = array<i64: 8, 128>}, {pipeline_mode = #tpu.pipeline_mode<synchronous>, transform_indices = @transform_1, window_bounds = array<i64: 4, 128, 128>}, {transform_indices = @transform_2, window_bounds = array<i64: 8, 128>}, {transform_indices = @transform_3, window_bounds = array<i64: 1, 2, 4, 128>}]} {
    %c0 = arith.constant 0 : index
    %c0_0 = arith.constant 0 : index
    %0 = vector.load %arg1[%c0, %c0_0] : memref<8x128xf32, #tpu.memory_space<vmem>>, vector<8x128xf32>
    %c0_1 = arith.constant 0 : index
    %c0_2 = arith.constant 0 : index
    %c0_3 = arith.constant 0 : index
    %1 = vector.load %arg2[%c0_1, %c0_2, %c0_3] : memref<4x128x128xf32, #tpu.memory_space<vmem>>, vector<1x128x128xf32>
    %2 = vector.shape_cast %1 : vector<1x128x128xf32> to vector<128x128xf32>
    %cst = arith.constant dense<0.000000e+00> : vector<8x128xf32>
    %3 = tpu.matmul %0, %2, %cst {dimension_numbers = #tpu.dot_dimension_numbers<[1], [0], [0], [1], [0, 0, 1, 1], [], []>} : vector<8x128xf32>, vector<128x128xf32>, vector<8x128xf32> -> vector<8x128xf32>
    %cst_4 = arith.constant 0.000000e+00 : f32
    %4 = vector.broadcast %cst_4 : f32 to vector<8x128xf32>
    %5 = arith.maximumf %3, %4 : vector<8x128xf32>
    %cst_5 = arith.constant dense<0.000000e+00> : vector<128xf32>
    %6 = vector.multi_reduction <add>, %5, %cst_5 [0] : vector<8x128xf32> to vector<128xf32>
    %7 = vector.shape_cast %6 : vector<128xf32> to vector<1x128xf32>
    %8 = arith.mulf %5, %5 : vector<8x128xf32>
    %cst_6 = arith.constant dense<0.000000e+00> : vector<128xf32>
    %9 = vector.multi_reduction <add>, %8, %cst_6 [0] : vector<8x128xf32> to vector<128xf32>
    %10 = vector.shape_cast %9 : vector<128xf32> to vector<1x128xf32>
    %c1 = arith.constant 1 : index
    %c0_7 = arith.constant 0 : index
    %c0_8 = arith.constant 0 : index
    %11 = vector.load %arg2[%c1, %c0_7, %c0_8] : memref<4x128x128xf32, #tpu.memory_space<vmem>>, vector<1x128x128xf32>
    %12 = vector.shape_cast %11 : vector<1x128x128xf32> to vector<128x128xf32>
    %cst_9 = arith.constant dense<0.000000e+00> : vector<8x128xf32>
    %13 = tpu.matmul %5, %12, %cst_9 {dimension_numbers = #tpu.dot_dimension_numbers<[1], [0], [0], [1], [0, 0, 1, 1], [], []>} : vector<8x128xf32>, vector<128x128xf32>, vector<8x128xf32> -> vector<8x128xf32>
    %cst_10 = arith.constant 0.000000e+00 : f32
    %14 = vector.broadcast %cst_10 : f32 to vector<8x128xf32>
    %15 = arith.maximumf %13, %14 : vector<8x128xf32>
    %cst_11 = arith.constant dense<0.000000e+00> : vector<128xf32>
    %16 = vector.multi_reduction <add>, %15, %cst_11 [0] : vector<8x128xf32> to vector<128xf32>
    %17 = vector.shape_cast %16 : vector<128xf32> to vector<1x128xf32>
    %18 = arith.mulf %15, %15 : vector<8x128xf32>
    %cst_12 = arith.constant dense<0.000000e+00> : vector<128xf32>
    %19 = vector.multi_reduction <add>, %18, %cst_12 [0] : vector<8x128xf32> to vector<128xf32>
    %20 = vector.shape_cast %19 : vector<128xf32> to vector<1x128xf32>
    %c2 = arith.constant 2 : index
    %c0_13 = arith.constant 0 : index
    %c0_14 = arith.constant 0 : index
    %21 = vector.load %arg2[%c2, %c0_13, %c0_14] : memref<4x128x128xf32, #tpu.memory_space<vmem>>, vector<1x128x128xf32>
    %22 = vector.shape_cast %21 : vector<1x128x128xf32> to vector<128x128xf32>
    %cst_15 = arith.constant dense<0.000000e+00> : vector<8x128xf32>
    %23 = tpu.matmul %15, %22, %cst_15 {dimension_numbers = #tpu.dot_dimension_numbers<[1], [0], [0], [1], [0, 0, 1, 1], [], []>} : vector<8x128xf32>, vector<128x128xf32>, vector<8x128xf32> -> vector<8x128xf32>
    %cst_16 = arith.constant 0.000000e+00 : f32
    %24 = vector.broadcast %cst_16 : f32 to vector<8x128xf32>
    %25 = arith.maximumf %23, %24 : vector<8x128xf32>
    %cst_17 = arith.constant dense<0.000000e+00> : vector<128xf32>
    %26 = vector.multi_reduction <add>, %25, %cst_17 [0] : vector<8x128xf32> to vector<128xf32>
    %27 = vector.shape_cast %26 : vector<128xf32> to vector<1x128xf32>
    %28 = arith.mulf %25, %25 : vector<8x128xf32>
    %cst_18 = arith.constant dense<0.000000e+00> : vector<128xf32>
    %29 = vector.multi_reduction <add>, %28, %cst_18 [0] : vector<8x128xf32> to vector<128xf32>
    %30 = vector.shape_cast %29 : vector<128xf32> to vector<1x128xf32>
    %c3 = arith.constant 3 : index
    %c0_19 = arith.constant 0 : index
    %c0_20 = arith.constant 0 : index
    %31 = vector.load %arg2[%c3, %c0_19, %c0_20] : memref<4x128x128xf32, #tpu.memory_space<vmem>>, vector<1x128x128xf32>
    %32 = vector.shape_cast %31 : vector<1x128x128xf32> to vector<128x128xf32>
    %cst_21 = arith.constant dense<0.000000e+00> : vector<8x128xf32>
    %33 = tpu.matmul %25, %32, %cst_21 {dimension_numbers = #tpu.dot_dimension_numbers<[1], [0], [0], [1], [0, 0, 1, 1], [], []>} : vector<8x128xf32>, vector<128x128xf32>, vector<8x128xf32> -> vector<8x128xf32>
    %cst_22 = arith.constant 0.000000e+00 : f32
    %34 = vector.broadcast %cst_22 : f32 to vector<8x128xf32>
    %35 = arith.maximumf %33, %34 : vector<8x128xf32>
    %cst_23 = arith.constant dense<0.000000e+00> : vector<128xf32>
    %36 = vector.multi_reduction <add>, %35, %cst_23 [0] : vector<8x128xf32> to vector<128xf32>
    %37 = vector.shape_cast %36 : vector<128xf32> to vector<1x128xf32>
    %38 = arith.mulf %35, %35 : vector<8x128xf32>
    %cst_24 = arith.constant dense<0.000000e+00> : vector<128xf32>
    %39 = vector.multi_reduction <add>, %38, %cst_24 [0] : vector<8x128xf32> to vector<128xf32>
    %40 = vector.shape_cast %39 : vector<128xf32> to vector<1x128xf32>
    %c0_25 = arith.constant 0 : index
    %c0_26 = arith.constant 0 : index
    %41 = vector.load %arg3[%c0_25, %c0_26] : memref<8x128xf32, #tpu.memory_space<vmem>>, vector<8x128xf32>
    tpu.vector_store %arg3[%c0_25, %c0_26], %35 {strides = array<i32>} : memref<8x128xf32, #tpu.memory_space<vmem>>, vector<8x128xf32>,
    %42 = tpu.concatenate %7, %17, %27, %37 in 0 : vector<1x128xf32>, vector<1x128xf32>, vector<1x128xf32>, vector<1x128xf32> -> vector<4x128xf32>
    %c0_27 = arith.constant 0 : index
    %c0_28 = arith.constant 0 : index
    %c0_29 = arith.constant 0 : index
    %c0_30 = arith.constant 0 : index
    %43 = vector.load %arg4[%c0_27, %c0_28, %c0_29, %c0_30] : memref<1x2x4x128xf32, #tpu.memory_space<vmem>>, vector<1x1x4x128xf32>
    %44 = vector.shape_cast %43 : vector<1x1x4x128xf32> to vector<4x128xf32>
    %45 = vector.shape_cast %42 : vector<4x128xf32> to vector<1x1x4x128xf32>
    tpu.vector_store %arg4[%c0_27, %c0_28, %c0_29, %c0_30], %45 {strides = array<i32>} : memref<1x2x4x128xf32, #tpu.memory_space<vmem>>, vector<1x1x4x128xf32>,
    %46 = tpu.concatenate %10, %20, %30, %40 in 0 : vector<1x128xf32>, vector<1x128xf32>, vector<1x128xf32>, vector<1x128xf32> -> vector<4x128xf32>
    %c0_31 = arith.constant 0 : index
    %c1_32 = arith.constant 1 : index
    %c0_33 = arith.constant 0 : index
    %c0_34 = arith.constant 0 : index
    %47 = vector.load %arg4[%c0_31, %c1_32, %c0_33, %c0_34] : memref<1x2x4x128xf32, #tpu.memory_space<vmem>>, vector<1x1x4x128xf32>
    %48 = vector.shape_cast %47 : vector<1x1x4x128xf32> to vector<4x128xf32>
    %49 = vector.shape_cast %46 : vector<4x128xf32> to vector<1x1x4x128xf32>
    tpu.vector_store %arg4[%c0_31, %c1_32, %c0_33, %c0_34], %49 {strides = array<i32>} : memref<1x2x4x128xf32, #tpu.memory_space<vmem>>, vector<1x1x4x128xf32>,
    return
  }
  func.func @transform_0(%arg0: i32) -> (i32, i32) {
    %c0_i32 = arith.constant 0 : i32
    %c0_i32_0 = arith.constant 0 : i32
    return %arg0, %c0_i32 : i32, i32
  }
  func.func @transform_1(%arg0: i32) -> (i32, i32, i32) {
    %c0_i32 = arith.constant 0 : i32
    %c0_i32_0 = arith.constant 0 : i32
    %c0_i32_1 = arith.constant 0 : i32
    %c0_i32_2 = arith.constant 0 : i32
    return %c0_i32, %c0_i32_0, %c0_i32_1 : i32, i32, i32
  }
  func.func @transform_2(%arg0: i32) -> (i32, i32) {
    %c0_i32 = arith.constant 0 : i32
    %c0_i32_0 = arith.constant 0 : i32
    return %arg0, %c0_i32 : i32, i32
  }
  func.func @transform_3(%arg0: i32) -> (i32, i32, i32, i32) {
    %c0_i32 = arith.constant 0 : i32
    %c0_i32_0 = arith.constant 0 : i32
    %c0_i32_1 = arith.constant 0 : i32
    %c0_i32_2 = arith.constant 0 : i32
    return %arg0, %c0_i32, %c0_i32_0, %c0_i32_1 : i32, i32, i32, i32
  }
}

</mosaic_0001>

<llo_original>
// kernel: mlp_forward_device.1
$region0: #{mlp_forward_device.1}
  #allocation0 [shape = 'u32[]', space=smem, size = 0x4, offset = 0x4, fixed_abs, tag = 'smem constant byte address 0x4 - core index']
  #allocation1 [shape = 'u32[144,128]{1,0:T(1,128)}', space=vmem, size = 0x12000, scoped, tag = 'internal scratch']
  %s0 = inlined_call_operand.hbm [shape: f32[8,128], index: 0, kind: input, shape index: {}]
  %s1 = inlined_call_operand.hbm [shape: f32[4,128,128], index: 1, kind: input, shape index: {}]
  %s2 = inlined_call_operand.hbm [shape: f32[8,128], index: 2, kind: output, shape index: {0}]
  %s3 = inlined_call_operand.vmem [shape: f32[1,2,4,128], index: 3, kind: output, shape index: {1}]
  %4 = xla_tuple %s2, %s3
  %s5 = sld [smem:[#allocation0]]
  $region34: #{mlp_forward_device.1} parent=0
    _
  %s7 = ssub.s32 1, %s5
  %s8 = scalar_select 0, %s7, %s5
  $region1: #{mlp_forward_device.1} parent=0
    #allocation2 [shape = 'u8[4096]{0}', space=vmem, size = 0x1000, scoped, tag = 'input window, operand 0, single buffered']
    #allocation3 [shape = 's32[1]{0}', space=sflag, size = 0x4, scoped, tag = 'scoped memory for mlp_forward_device.1']
    #allocation4 [shape = 's32[1]{0}', space=sflag, size = 0x4, scoped, tag = 'scoped memory for mlp_forward_device.1']
    #allocation5 [shape = 'u8[262144]{0}', space=vmem, size = 0x40000, scoped, tag = 'input window, operand 1, single buffered']
    #allocation6 [shape = 's32[1]{0}', space=sflag, size = 0x4, scoped, tag = 'scoped memory for mlp_forward_device.1']
    #allocation7 [shape = 'u8[4096]{0}', space=vmem, size = 0x1000, scoped, tag = 'output window, operand 0, single buffered']
    %9 = vsyncpa [#allocation3], 0
    %10 = vsyncpa [#allocation6], 0
    %11 = vsyncpa [#allocation4], 0
    // Predicated region
    $region2: #{mlp_forward_device.1} parent=1 // pred_check
      _
    $region3: #{mlp_forward_device.1} parent=1 // pred_check_branch
      %13 = sbr.rel (0) target = $region5
    $region4: #{mlp_forward_device.1} parent=1 // pred_region
      %s15 = ssub.s32 128, 128
      %16 = vsyncadd [#allocation3], %s15
      %s18 = sshll.u32 [#allocation2], 4
      %s19 = int_to_ptr.vmem [resolvable:$true] %s18
      %21 = dma.hbm_to_vmem [thread:$0]  %s0, 128, %s19, [#allocation3]
    $region5: #{mlp_forward_device.1} parent=1 // pred_fallthru
      _
    // Predicated region
    $region6: #{mlp_forward_device.1} parent=1 // pred_check
      _
    $region7: #{mlp_forward_device.1} parent=1 // pred_check_branch
      %23 = sbr.rel (0) target = $region9
    $region8: #{mlp_forward_device.1} parent=1 // pred_region
      %s25 = ssub.s32 8192, 8192
      %26 = vsyncadd [#allocation6], %s25
      %s27 = sshll.u32 [#allocation5], 4
      %s28 = int_to_ptr.vmem [resolvable:$true] %s27
      %33 = dma.hbm_to_vmem [thread:$0]  %s1, 8192, %s28, [#allocation6], 128, 128, 8
    $region9: #{mlp_forward_device.1} parent=1 // pred_fallthru
      _
    // Predicated region
    $region10: #{mlp_forward_device.1} parent=1 // pred_check
      _
    $region11: #{mlp_forward_device.1} parent=1 // pred_check_branch
      %35 = sbr.rel (0) target = $region13
    $region12: #{mlp_forward_device.1} parent=1 // pred_region
      %36 = dma.done [#allocation3], 128
    $region13: #{mlp_forward_device.1} parent=1 // pred_fallthru
      _
    // Predicated region
    $region14: #{mlp_forward_device.1} parent=1 // pred_check
      _
    $region15: #{mlp_forward_device.1} parent=1 // pred_check_branch
      %38 = sbr.rel (0) target = $region17
    $region16: #{mlp_forward_device.1} parent=1 // pred_region
      %39 = dma.done [#allocation6], 8192
    $region17: #{mlp_forward_device.1} parent=1 // pred_fallthru
      _
    %v40 = vld [vmem:[#allocation2] sm:$0xff]
    %v41 = vld [vmem:[#allocation5] sm:$0xff]
    %v42 = vld [vmem:[#allocation5 + $0x8] sm:$0xff]
    %v43 = vld [vmem:[#allocation5 + $0x10] sm:$0xff]
    %v44 = vld [vmem:[#allocation5 + $0x18] sm:$0xff]
    %v45 = vld [vmem:[#allocation5 + $0x20] sm:$0xff]
    %v46 = vld [vmem:[#allocation5 + $0x28] sm:$0xff]
    %v47 = vld [vmem:[#allocation5 + $0x30] sm:$0xff]
    %v48 = vld [vmem:[#allocation5 + $0x38] sm:$0xff]
    %v49 = vld [vmem:[#allocation5 + $0x40] sm:$0xff]
    %v50 = vld [vmem:[#allocation5 + $0x48] sm:$0xff]
    %v51 = vld [vmem:[#allocation5 + $0x50] sm:$0xff]
    %v52 = vld [vmem:[#allocation5 + $0x58] sm:$0xff]
    %v53 = vld [vmem:[#allocation5 + $0x60] sm:$0xff]
    %v54 = vld [vmem:[#allocation5 + $0x68] sm:$0xff]
    %v55 = vld [vmem:[#allocation5 + $0x70] sm:$0xff]
    %v56 = vld [vmem:[#allocation5 + $0x78] sm:$0xff]
    %57 = vmatprep.subr.mxu0 0.0
    %58 = vmatpush1.msra.mxu0 %v41
    %59 = vmatprep.subr.mxu0 0.0
    %60 = vmatpush1.msra.mxu0 %v42
    %61 = vmatprep.subr.mxu0 0.0
    %62 = vmatpush1.msra.mxu0 %v43
    %63 = vmatprep.subr.mxu0 0.0
    %64 = vmatpush1.msra.mxu0 %v44
    %65 = vmatprep.subr.mxu0 0.0
    %66 = vmatpush1.msra.mxu0 %v45
    %67 = vmatprep.subr.mxu0 0.0
    %68 = vmatpush1.msra.mxu0 %v46
    %69 = vmatprep.subr.mxu0 0.0
    %70 = vmatpush1.msra.mxu0 %v47
    %71 = vmatprep.subr.mxu0 0.0
    %72 = vmatpush1.msra.mxu0 %v48
    %73 = vmatprep.subr.mxu0 0.0
    %74 = vmatpush1.msra.mxu0 %v49
    %75 = vmatprep.subr.mxu0 0.0
    %76 = vmatpush1.msra.mxu0 %v50
    %77 = vmatprep.subr.mxu0 0.0
    %78 = vmatpush1.msra.mxu0 %v51
    %79 = vmatprep.subr.mxu0 0.0
    %80 = vmatpush1.msra.mxu0 %v52
    %81 = vmatprep.subr.mxu0 0.0
    %82 = vmatpush1.msra.mxu0 %v53
    %83 = vmatprep.subr.mxu0 0.0
    %84 = vmatpush1.msra.mxu0 %v54
    %85 = vmatprep.subr.mxu0 0.0
    %86 = vmatpush1.msra.mxu0 %v55
    %87 = vmatprep.subr.mxu0 0.0
    %88 = vmatpush1.msra.mxu0 %v56
    %89 = vmatprep.subr.mxu0 0.0
    %90 = vmatpush1.msra.mxu0 0.0
    %91 = vmatprep.subr.mxu0 0.0
    %92 = vmatpush1.msra.mxu0 0.0
    %93 = vmatprep.subr.mxu0 0.0
    %94 = vmatpush1.msra.mxu0 0.0
    %95 = vmatprep.subr.mxu0 0.0
    %96 = vmatpush1.msra.mxu0 0.0
    %97 = vmatprep.subr.mxu0 0.0
    %98 = vmatpush1.msra.mxu0 0.0
    %99 = vmatprep.subr.mxu0 0.0
    %100 = vmatpush1.msra.mxu0 0.0
    %101 = vmatprep.subr.mxu0 0.0
    %102 = vmatpush1.msra.mxu0 0.0
    %103 = vmatprep.subr.mxu0 0.0
    %104 = vmatpush1.msra.mxu0 0.0
    %105 = vmatprep.subr.mxu0 0.0
    %106 = vmatpush1.msra.mxu0 0.0
    %107 = vmatprep.subr.mxu0 0.0
    %108 = vmatpush1.msra.mxu0 0.0
    %109 = vmatprep.subr.mxu0 0.0
    %110 = vmatpush1.msra.mxu0 0.0
    %111 = vmatprep.subr.mxu0 0.0
    %112 = vmatpush1.msra.mxu0 0.0
    %113 = vmatprep.subr.mxu0 0.0
    %114 = vmatpush1.msra.mxu0 0.0
    %115 = vmatprep.subr.mxu0 0.0
    %116 = vmatpush1.msra.mxu0 0.0
    %117 = vmatprep.subr.mxu0 0.0
    %118 = vmatpush1.msra.mxu0 0.0
    %119 = vmatprep.subr.mxu0 0.0
    %120 = vmatpush1.msra.mxu0 0.0
    %121 = vmatprep.mubr.f32.mxu0 0.0
    %122 = vmatmul.mubr.f32.gmra.mrb[0].mxu0 %v40
    %v123 = vpop.f32.mrb[0].mxu0
    %v124 = vadd.f32 0.0, %v123
    %v125 = vpop.f32.mrb[0].mxu0
    %126 = vdwg.mxu0
    %v127 = vmax.f32 %v124, 0.0
    %v128 = vrot.slane %v127, 4
    %v129 = vadd.f32 %v127, %v128
    %v130 = vrot.slane %v129, 2
    %v131 = vadd.f32 %v129, %v130
    %v132 = vrot.slane %v131, 1
    %v133 = vadd.f32 %v131, %v132
    %v134 = vmul.f32 %v127, %v127
    %v135 = vrot.slane %v134, 4
    %v136 = vadd.f32 %v134, %v135
    %v137 = vrot.slane %v136, 2
    %v138 = vadd.f32 %v136, %v137
    %v139 = vrot.slane %v138, 1
    %v140 = vadd.f32 %v138, %v139
    %s141 = scalar_lea.vmem [#allocation5], 128
    %v142 = vld [vmem:[%s141] sm:$0xff]
    %v143 = vld [vmem:[%s141 + $0x8] sm:$0xff]
    %v144 = vld [vmem:[%s141 + $0x10] sm:$0xff]
    %v145 = vld [vmem:[%s141 + $0x18] sm:$0xff]
    %v146 = vld [vmem:[%s141 + $0x20] sm:$0xff]
    %v147 = vld [vmem:[%s141 + $0x28] sm:$0xff]
    %v148 = vld [vmem:[%s141 + $0x30] sm:$0xff]
    %v149 = vld [vmem:[%s141 + $0x38] sm:$0xff]
    %v150 = vld [vmem:[%s141 + $0x40] sm:$0xff]
    %v151 = vld [vmem:[%s141 + $0x48] sm:$0xff]
    %v152 = vld [vmem:[%s141 + $0x50] sm:$0xff]
    %v153 = vld [vmem:[%s141 + $0x58] sm:$0xff]
    %v154 = vld [vmem:[%s141 + $0x60] sm:$0xff]
    %v155 = vld [vmem:[%s141 + $0x68] sm:$0xff]
    %v156 = vld [vmem:[%s141 + $0x70] sm:$0xff]
    %v157 = vld [vmem:[%s141 + $0x78] sm:$0xff]
    %158 = vmatprep.subr.mxu0 0.0
    %159 = vmatpush1.msra.mxu0 %v142
    %160 = vmatprep.subr.mxu0 0.0
    %161 = vmatpush1.msra.mxu0 %v143
    %162 = vmatprep.subr.mxu0 0.0
    %163 = vmatpush1.msra.mxu0 %v144
    %164 = vmatprep.subr.mxu0 0.0
    %165 = vmatpush1.msra.mxu0 %v145
    %166 = vmatprep.subr.mxu0 0.0
    %167 = vmatpush1.msra.mxu0 %v146
    %168 = vmatprep.subr.mxu0 0.0
    %169 = vmatpush1.msra.mxu0 %v147
    %170 = vmatprep.subr.mxu0 0.0
    %171 = vmatpush1.msra.mxu0 %v148
    %172 = vmatprep.subr.mxu0 0.0
    %173 = vmatpush1.msra.mxu0 %v149
    %174 = vmatprep.subr.mxu0 0.0
    %175 = vmatpush1.msra.mxu0 %v150
    %176 = vmatprep.subr.mxu0 0.0
    %177 = vmatpush1.msra.mxu0 %v151
    %178 = vmatprep.subr.mxu0 0.0
    %179 = vmatpush1.msra.mxu0 %v152
    %180 = vmatprep.subr.mxu0 0.0
    %181 = vmatpush1.msra.mxu0 %v153
    %182 = vmatprep.subr.mxu0 0.0
    %183 = vmatpush1.msra.mxu0 %v154
    %184 = vmatprep.subr.mxu0 0.0
    %185 = vmatpush1.msra.mxu0 %v155
    %186 = vmatprep.subr.mxu0 0.0
    %187 = vmatpush1.msra.mxu0 %v156
    %188 = vmatprep.subr.mxu0 0.0
    %189 = vmatpush1.msra.mxu0 %v157
    %190 = vmatprep.subr.mxu0 0.0
    %191 = vmatpush1.msra.mxu0 0.0
    %192 = vmatprep.subr.mxu0 0.0
    %193 = vmatpush1.msra.mxu0 0.0
    %194 = vmatprep.subr.mxu0 0.0
    %195 = vmatpush1.msra.mxu0 0.0
    %196 = vmatprep.subr.mxu0 0.0
    %197 = vmatpush1.msra.mxu0 0.0
    %198 = vmatprep.subr.mxu0 0.0
    %199 = vmatpush1.msra.mxu0 0.0
    %200 = vmatprep.subr.mxu0 0.0
    %201 = vmatpush1.msra.mxu0 0.0
    %202 = vmatprep.subr.mxu0 0.0
    %203 = vmatpush1.msra.mxu0 0.0
    %204 = vmatprep.subr.mxu0 0.0
    %205 = vmatpush1.msra.mxu0 0.0
    %206 = vmatprep.subr.mxu0 0.0
    %207 = vmatpush1.msra.mxu0 0.0
    %208 = vmatprep.subr.mxu0 0.0
    %209 = vmatpush1.msra.mxu0 0.0
    %210 = vmatprep.subr.mxu0 0.0
    %211 = vmatpush1.msra.mxu0 0.0
    %212 = vmatprep.subr.mxu0 0.0
    %213 = vmatpush1.msra.mxu0 0.0
    %214 = vmatprep.subr.mxu0 0.0
    %215 = vmatpush1.msra.mxu0 0.0
    %216 = vmatprep.subr.mxu0 0.0
    %217 = vmatpush1.msra.mxu0 0.0
    %218 = vmatprep.subr.mxu0 0.0
    %219 = vmatpush1.msra.mxu0 0.0
    %220 = vmatprep.subr.mxu0 0.0
    %221 = vmatpush1.msra.mxu0 0.0
    %222 = vmatprep.mubr.f32.mxu0 0.0
    %223 = vmatmul.mubr.f32.gmra.mrb[0].mxu0 %v127
    %v224 = vpop.f32.mrb[0].mxu0
    %v225 = vadd.f32 0.0, %v224
    %v226 = vpop.f32.mrb[0].mxu0
    %227 = vdwg.mxu0
    %v228 = vmax.f32 %v225, 0.0
    %v229 = vrot.slane %v228, 4
    %v230 = vadd.f32 %v228, %v229
    %v231 = vrot.slane %v230, 2
    %v232 = vadd.f32 %v230, %v231
    %v233 = vrot.slane %v232, 1
    %v234 = vadd.f32 %v232, %v233
    %v235 = vmul.f32 %v228, %v228
    %v236 = vrot.slane %v235, 4
    %v237 = vadd.f32 %v235, %v236
    %v238 = vrot.slane %v237, 2
    %v239 = vadd.f32 %v237, %v238
    %v240 = vrot.slane %v239, 1
    %v241 = vadd.f32 %v239, %v240
    %s242 = scalar_lea.vmem [#allocation5], 256
    %v243 = vld [vmem:[%s242] sm:$0xff]
    %v244 = vld [vmem:[%s242 + $0x8] sm:$0xff]
    %v245 = vld [vmem:[%s242 + $0x10] sm:$0xff]
    %v246 = vld [vmem:[%s242 + $0x18] sm:$0xff]
    %v247 = vld [vmem:[%s242 + $0x20] sm:$0xff]
    %v248 = vld [vmem:[%s242 + $0x28] sm:$0xff]
    %v249 = vld [vmem:[%s242 + $0x30] sm:$0xff]
    %v250 = vld [vmem:[%s242 + $0x38] sm:$0xff]
    %v251 = vld [vmem:[%s242 + $0x40] sm:$0xff]
    %v252 = vld [vmem:[%s242 + $0x48] sm:$0xff]
    %v253 = vld [vmem:[%s242 + $0x50] sm:$0xff]
    %v254 = vld [vmem:[%s242 + $0x58] sm:$0xff]
    %v255 = vld [vmem:[%s242 + $0x60] sm:$0xff]
    %v256 = vld [vmem:[%s242 + $0x68] sm:$0xff]
    %v257 = vld [vmem:[%s242 + $0x70] sm:$0xff]
    %v258 = vld [vmem:[%s242 + $0x78] sm:$0xff]
    %259 = vmatprep.subr.mxu0 0.0
    %260 = vmatpush1.msra.mxu0 %v243
    %261 = vmatprep.subr.mxu0 0.0
    %262 = vmatpush1.msra.mxu0 %v244
    %263 = vmatprep.subr.mxu0 0.0
    %264 = vmatpush1.msra.mxu0 %v245
    %265 = vmatprep.subr.mxu0 0.0
    %266 = vmatpush1.msra.mxu0 %v246
    %267 = vmatprep.subr.mxu0 0.0
    %268 = vmatpush1.msra.mxu0 %v247
    %269 = vmatprep.subr.mxu0 0.0
    %270 = vmatpush1.msra.mxu0 %v248
    %271 = vmatprep.subr.mxu0 0.0
    %272 = vmatpush1.msra.mxu0 %v249
    %273 = vmatprep.subr.mxu0 0.0
    %274 = vmatpush1.msra.mxu0 %v250
    %275 = vmatprep.subr.mxu0 0.0
    %276 = vmatpush1.msra.mxu0 %v251
    %277 = vmatprep.subr.mxu0 0.0
    %278 = vmatpush1.msra.mxu0 %v252
    %279 = vmatprep.subr.mxu0 0.0
    %280 = vmatpush1.msra.mxu0 %v253
    %281 = vmatprep.subr.mxu0 0.0
    %282 = vmatpush1.msra.mxu0 %v254
    %283 = vmatprep.subr.mxu0 0.0
    %284 = vmatpush1.msra.mxu0 %v255
    %285 = vmatprep.subr.mxu0 0.0
    %286 = vmatpush1.msra.mxu0 %v256
    %287 = vmatprep.subr.mxu0 0.0
    %288 = vmatpush1.msra.mxu0 %v257
    %289 = vmatprep.subr.mxu0 0.0
    %290 = vmatpush1.msra.mxu0 %v258
    %291 = vmatprep.subr.mxu0 0.0
    %292 = vmatpush1.msra.mxu0 0.0
    %293 = vmatprep.subr.mxu0 0.0
    %294 = vmatpush1.msra.mxu0 0.0
    %295 = vmatprep.subr.mxu0 0.0
    %296 = vmatpush1.msra.mxu0 0.0
    %297 = vmatprep.subr.mxu0 0.0
    %298 = vmatpush1.msra.mxu0 0.0
    %299 = vmatprep.subr.mxu0 0.0
    %300 = vmatpush1.msra.mxu0 0.0
    %301 = vmatprep.subr.mxu0 0.0
    %302 = vmatpush1.msra.mxu0 0.0
    %303 = vmatprep.subr.mxu0 0.0
    %304 = vmatpush1.msra.mxu0 0.0
    %305 = vmatprep.subr.mxu0 0.0
    %306 = vmatpush1.msra.mxu0 0.0
    %307 = vmatprep.subr.mxu0 0.0
    %308 = vmatpush1.msra.mxu0 0.0
    %309 = vmatprep.subr.mxu0 0.0
    %310 = vmatpush1.msra.mxu0 0.0
    %311 = vmatprep.subr.mxu0 0.0
    %312 = vmatpush1.msra.mxu0 0.0
    %313 = vmatprep.subr.mxu0 0.0
    %314 = vmatpush1.msra.mxu0 0.0
    %315 = vmatprep.subr.mxu0 0.0
    %316 = vmatpush1.msra.mxu0 0.0
    %317 = vmatprep.subr.mxu0 0.0
    %318 = vmatpush1.msra.mxu0 0.0
    %319 = vmatprep.subr.mxu0 0.0
    %320 = vmatpush1.msra.mxu0 0.0
    %321 = vmatprep.subr.mxu0 0.0
    %322 = vmatpush1.msra.mxu0 0.0
    %323 = vmatprep.mubr.f32.mxu0 0.0
    %324 = vmatmul.mubr.f32.gmra.mrb[0].mxu0 %v228
    %v325 = vpop.f32.mrb[0].mxu0
    %v326 = vadd.f32 0.0, %v325
    %v327 = vpop.f32.mrb[0].mxu0
    %328 = vdwg.mxu0
    %v329 = vmax.f32 %v326, 0.0
    %v330 = vrot.slane %v329, 4
    %v331 = vadd.f32 %v329, %v330
    %v332 = vrot.slane %v331, 2
    %v333 = vadd.f32 %v331, %v332
    %v334 = vrot.slane %v333, 1
    %v335 = vadd.f32 %v333, %v334
    %v336 = vmul.f32 %v329, %v329
    %v337 = vrot.slane %v336, 4
    %v338 = vadd.f32 %v336, %v337
    %v339 = vrot.slane %v338, 2
    %v340 = vadd.f32 %v338, %v339
    %v341 = vrot.slane %v340, 1
    %v342 = vadd.f32 %v340, %v341
    %s343 = scalar_lea.vmem [#allocation5], 384
    %v344 = vld [vmem:[%s343] sm:$0xff]
    %v345 = vld [vmem:[%s343 + $0x8] sm:$0xff]
    %v346 = vld [vmem:[%s343 + $0x10] sm:$0xff]
    %v347 = vld [vmem:[%s343 + $0x18] sm:$0xff]
    %v348 = vld [vmem:[%s343 + $0x20] sm:$0xff]
    %v349 = vld [vmem:[%s343 + $0x28] sm:$0xff]
    %v350 = vld [vmem:[%s343 + $0x30] sm:$0xff]
    %v351 = vld [vmem:[%s343 + $0x38] sm:$0xff]
    %v352 = vld [vmem:[%s343 + $0x40] sm:$0xff]
    %v353 = vld [vmem:[%s343 + $0x48] sm:$0xff]
    %v354 = vld [vmem:[%s343 + $0x50] sm:$0xff]
    %v355 = vld [vmem:[%s343 + $0x58] sm:$0xff]
    %v356 = vld [vmem:[%s343 + $0x60] sm:$0xff]
    %v357 = vld [vmem:[%s343 + $0x68] sm:$0xff]
    %v358 = vld [vmem:[%s343 + $0x70] sm:$0xff]
    %v359 = vld [vmem:[%s343 + $0x78] sm:$0xff]
    %360 = vmatprep.subr.mxu0 0.0
    %361 = vmatpush1.msra.mxu0 %v344
    %362 = vmatprep.subr.mxu0 0.0
    %363 = vmatpush1.msra.mxu0 %v345
    %364 = vmatprep.subr.mxu0 0.0
    %365 = vmatpush1.msra.mxu0 %v346
    %366 = vmatprep.subr.mxu0 0.0
    %367 = vmatpush1.msra.mxu0 %v347
    %368 = vmatprep.subr.mxu0 0.0
    %369 = vmatpush1.msra.mxu0 %v348
    %370 = vmatprep.subr.mxu0 0.0
    %371 = vmatpush1.msra.mxu0 %v349
    %372 = vmatprep.subr.mxu0 0.0
    %373 = vmatpush1.msra.mxu0 %v350
    %374 = vmatprep.subr.mxu0 0.0
    %375 = vmatpush1.msra.mxu0 %v351
    %376 = vmatprep.subr.mxu0 0.0
    %377 = vmatpush1.msra.mxu0 %v352
    %378 = vmatprep.subr.mxu0 0.0
    %379 = vmatpush1.msra.mxu0 %v353
    %380 = vmatprep.subr.mxu0 0.0
    %381 = vmatpush1.msra.mxu0 %v354
    %382 = vmatprep.subr.mxu0 0.0
    %383 = vmatpush1.msra.mxu0 %v355
    %384 = vmatprep.subr.mxu0 0.0
    %385 = vmatpush1.msra.mxu0 %v356
    %386 = vmatprep.subr.mxu0 0.0
    %387 = vmatpush1.msra.mxu0 %v357
    %388 = vmatprep.subr.mxu0 0.0
    %389 = vmatpush1.msra.mxu0 %v358
    %390 = vmatprep.subr.mxu0 0.0
    %391 = vmatpush1.msra.mxu0 %v359
    %392 = vmatprep.subr.mxu0 0.0
    %393 = vmatpush1.msra.mxu0 0.0
    %394 = vmatprep.subr.mxu0 0.0
    %395 = vmatpush1.msra.mxu0 0.0
    %396 = vmatprep.subr.mxu0 0.0
    %397 = vmatpush1.msra.mxu0 0.0
    %398 = vmatprep.subr.mxu0 0.0
    %399 = vmatpush1.msra.mxu0 0.0
    %400 = vmatprep.subr.mxu0 0.0
    %401 = vmatpush1.msra.mxu0 0.0
    %402 = vmatprep.subr.mxu0 0.0
    %403 = vmatpush1.msra.mxu0 0.0
    %404 = vmatprep.subr.mxu0 0.0
    %405 = vmatpush1.msra.mxu0 0.0
    %406 = vmatprep.subr.mxu0 0.0
    %407 = vmatpush1.msra.mxu0 0.0
    %408 = vmatprep.subr.mxu0 0.0
    %409 = vmatpush1.msra.mxu0 0.0
    %410 = vmatprep.subr.mxu0 0.0
    %411 = vmatpush1.msra.mxu0 0.0
    %412 = vmatprep.subr.mxu0 0.0
    %413 = vmatpush1.msra.mxu0 0.0
    %414 = vmatprep.subr.mxu0 0.0
    %415 = vmatpush1.msra.mxu0 0.0
    %416 = vmatprep.subr.mxu0 0.0
    %417 = vmatpush1.msra.mxu0 0.0
    %418 = vmatprep.subr.mxu0 0.0
    %419 = vmatpush1.msra.mxu0 0.0
    %420 = vmatprep.subr.mxu0 0.0
    %421 = vmatpush1.msra.mxu0 0.0
    %422 = vmatprep.subr.mxu0 0.0
    %423 = vmatpush1.msra.mxu0 0.0
    %424 = vmatprep.mubr.f32.mxu0 0.0
    %425 = vmatmul.mubr.f32.gmra.mrb[0].mxu0 %v329
    %v426 = vpop.f32.mrb[0].mxu0
    %v427 = vadd.f32 0.0, %v426
    %v428 = vpop.f32.mrb[0].mxu0
    %429 = vdwg.mxu0
    %v430 = vmax.f32 %v427, 0.0
    %v431 = vrot.slane %v430, 4
    %v432 = vadd.f32 %v430, %v431
    %v433 = vrot.slane %v432, 2
    %v434 = vadd.f32 %v432, %v433
    %v435 = vrot.slane %v434, 1
    %v436 = vadd.f32 %v434, %v435
    %v437 = vmul.f32 %v430, %v430
    %v438 = vrot.slane %v437, 4
    %v439 = vadd.f32 %v437, %v438
    %v440 = vrot.slane %v439, 2
    %v441 = vadd.f32 %v439, %v440
    %v442 = vrot.slane %v441, 1
    %v443 = vadd.f32 %v441, %v442
    %444 = vst [vmem:[#allocation7] sm:$0xff] %v430
    %vm445 = vcmask 1040384
    %v446 = vsel %vm445, %v133, %v234
    %vm447 = vcmask 1041408
    %v448 = vsel %vm447, %v446, %v335
    %vm449 = vcmask 1042432
    %v450 = vsel %vm449, %v448, %v436
    %451 = vst [vmem:[%s3] sm:$0xf] %v450
    %v452 = vsel %vm445, %v140, %v241
    %v453 = vsel %vm447, %v452, %v342
    %v454 = vsel %vm449, %v453, %v443
    %s455 = scalar_lea.vmem %s3, 4
    %456 = vst [vmem:[%s455] sm:$0xf] %v454
    // Predicated region
    $region18: #{mlp_forward_device.1} parent=1 // pred_check
      _
    $region19: #{mlp_forward_device.1} parent=1 // pred_check_branch
      %458 = sbr.rel (0) target = $region21
    $region20: #{mlp_forward_device.1} parent=1 // pred_region
      %s460 = ssub.s32 128, 128
      %461 = vsyncadd [#allocation4], %s460
      %s463 = sshll.u32 [#allocation7], 4
      %s464 = int_to_ptr.vmem [resolvable:$true] %s463
      %466 = dma.vmem_to_hbm [thread:$0]  %s464, 128, %s2, [#allocation4]
    $region21: #{mlp_forward_device.1} parent=1 // pred_fallthru
      _
    // Predicated region
    $region22: #{mlp_forward_device.1} parent=1 // pred_check
      _
    $region23: #{mlp_forward_device.1} parent=1 // pred_check_branch
      %468 = sbr.rel (0) target = $region25
    $region24: #{mlp_forward_device.1} parent=1 // pred_region
      _
    $region25: #{mlp_forward_device.1} parent=1 // pred_fallthru
      _
    // Predicated region
    $region26: #{mlp_forward_device.1} parent=1 // pred_check
      _
    $region27: #{mlp_forward_device.1} parent=1 // pred_check_branch
      %470 = sbr.rel (0) target = $region29
    $region28: #{mlp_forward_device.1} parent=1 // pred_region
      %471 = dma.done [#allocation4], 128
    $region29: #{mlp_forward_device.1} parent=1 // pred_fallthru
      _
    // Predicated region
    $region30: #{mlp_forward_device.1} parent=1 // pred_check
      _
    $region31: #{mlp_forward_device.1} parent=1 // pred_check_branch
      %473 = sbr.rel (0) target = $region33
    $region32: #{mlp_forward_device.1} parent=1 // pred_region
      _
    $region33: #{mlp_forward_device.1} parent=1 // pred_fallthru
      _
    %474 = vsyncpa [#allocation3], 1
    %475 = vsyncpa [#allocation6], 1
    %476 = vsyncpa [#allocation4], 1

</llo_original>
